<compile_context>
chip_gen: v7x
topology: tpu7x:2x2x1
jax: 0.10.0
libtpu: 0.0.40
codegen_flags: <defaults>
</compile_context>

<pallas_src>
import functools

import jax
import jax.numpy as jnp
from jax.experimental import pallas as pl
from jax.experimental.pallas import tpu as pltpu


# ---------------------------------------------------------------------------
# Config (mirrors the module __init__ arguments / config dict)
# ---------------------------------------------------------------------------
DIM_IN_MAPPING = 32      # config['dim_in_mapping']
DIM_IN_FILM = 16         # dim_in_film
DIM_OUT_FILM = 32        # dim_out_film
N_NEURONS = 64           # config['n_neurons_mapping']
N_HIDDEN_LAYERS = 3      # config['n_hidden_layers_mapping']

LANE = 128               # hidden width padded to a full vreg lane dim for the MXU
ROW_TILE_MAX = 2048      # multiple of 256; amortizes per-grid-step overhead
SMALL_BATCH = 256        # <= this many rows: single grid step (splitting = pure overhead)

NEG_SLOPE = 0.2


def _leaky_relu(h, slope=NEG_SLOPE):
    return jnp.where(h > 0, h, slope * h)


def _round_up(a, b):
    return (a + b - 1) // b * b


# ---------------------------------------------------------------------------
# Kernel: one row-tile of the fused MLP
# ---------------------------------------------------------------------------
def _kernel(x_ref, bias_ref, *rest, n_hidden):
    """rest = (w0x, wh_0 .. wh_{n_hidden-1}, wf, o_ref)

    x_ref   : (row_tile, DIM_IN_MAPPING)   f32 (HBM dtype; cast to matmul dtype here)
    bias_ref: (1, LANE)                    f32, = exp_condition @ W0e (lane-padded)
    w0x_ref : (DIM_IN_MAPPING, LANE)       compute dtype (bf16 by default)
    wh_refs : (LANE, LANE) each            compute dtype
    wf_ref  : (LANE, DIM_OUT_FILM)         compute dtype
    o_ref   : (row_tile, DIM_OUT_FILM)     f32 (un-padded output columns)
    """
    w0x_ref = rest[0]
    wh_refs = rest[1:1 + n_hidden]
    wf_ref = rest[1 + n_hidden]
    o_ref = rest[2 + n_hidden]

    cdt = w0x_ref.dtype  # MXU input dtype; accumulation stays f32

    # First mapping linear on the (virtual) concat input + LeakyReLU(0.2).
    # concat([x, e]) @ W0 == x @ W0x + e @ W0e; the grid-invariant e @ W0e term
    # arrives pre-computed as `bias` (f32).
    h = jnp.dot(x_ref[...].astype(cdt), w0x_ref[...],
                preferred_element_type=jnp.float32)
    h = _leaky_relu(h + bias_ref[...])            # f32 activation (v5e-friendly)

    # Hidden mapping layers.
    for wh_ref in wh_refs:
        h = jnp.dot(h.astype(cdt), wh_ref[...], preferred_element_type=jnp.float32)
        h = _leaky_relu(h)

    # Final (zero-init) linear, no activation; lane-masked 32-col store is cheap.
    o_ref[...] = jnp.dot(h.astype(cdt), wf_ref[...],
                         preferred_element_type=jnp.float32).astype(o_ref.dtype)


# ---------------------------------------------------------------------------
# One-time parameter preparation (pad + cast; cache the result across calls)
# ---------------------------------------------------------------------------
def prepare_params(params, *, compute_dtype=jnp.bfloat16):
    """params = (w0x, w0e, wh_list, wf), all stored (in, out) == torch weight.T."""
    w0x, w0e, wh_list, wf = params

    def pad_cols(w, cols):
        return jnp.pad(w, ((0, 0), (0, cols - w.shape[1])))

    def pad_rows(w, rows):
        return jnp.pad(w, ((0, rows - w.shape[0]), (0, 0)))

    w0x_p = pad_cols(w0x, LANE).astype(compute_dtype)            # (32, 128)
    w0e_p = pad_cols(w0e, LANE).astype(jnp.float32)              # (16, 128) f32 bias path
    wh_p = tuple(pad_rows(pad_cols(w, LANE), LANE).astype(compute_dtype)
                 for w in wh_list)                               # (128, 128) each
    wf_p = pad_rows(wf, LANE).astype(compute_dtype)              # (128, 32) true out width
    return w0x_p, w0e_p, wh_p, wf_p


# ---------------------------------------------------------------------------
# Forward wrapper
# ---------------------------------------------------------------------------
def deformation_forward(x, exp_condition, prepared_params):
    """x: (N, DIM_IN_MAPPING) f32, exp_condition: (1, DIM_IN_FILM)."""
    w0x_p, w0e_p, wh_p, wf_p = prepared_params
    n, dim_in_map = x.shape
    n_hidden = len(wh_p)
    dim_out = wf_p.shape[1]

    # Grid-invariant condition contribution (tiny; stays f32).
    bias = jnp.dot(exp_condition.astype(jnp.float32), w0e_p)     # (1, LANE) f32

    # Row-tile choice: big tiles to amortize per-step overhead, but >=2 steps for
    # mid/large batches so the "parallel" axis shards across v7x's two TCs.
    if n <= SMALL_BATCH:
        row_tile = _round_up(n, 8)
    else:
        row_tile = min(ROW_TILE_MAX, _round_up(-(-n // 2), 256))
    grid = (pl.cdiv(n, row_tile),)

    full = lambda shape: pl.BlockSpec(shape, lambda i: (0, 0))
    in_specs = [
        pl.BlockSpec((row_tile, dim_in_map), lambda i: (i, 0)),  # x rows (ragged tail OK)
        full(bias.shape),
        full(w0x_p.shape),
        *[full(w.shape) for w in wh_p],
        full(wf_p.shape),
    ]
    out_spec = pl.BlockSpec((row_tile, dim_out), lambda i: (i, 0))  # un-padded 32-col out

    w_bytes = sum(int(w.size) * w.dtype.itemsize for w in (w0x_p, *wh_p, wf_p))
    flops = 2 * n * (dim_in_map * LANE + n_hidden * LANE * LANE + LANE * dim_out)
    bytes_accessed = (n * dim_in_map * x.dtype.itemsize   # x read
                      + n * dim_out * 4                   # f32 output write
                      + w_bytes                           # weights
                      + int(bias.size) * 4)               # bias

    kernel = functools.partial(_kernel, n_hidden=n_hidden)

    return pl.pallas_call(
        kernel,
        out_shape=jax.ShapeDtypeStruct((n, dim_out), jnp.float32),
        grid_spec=pltpu.PrefetchScalarGridSpec(
            num_scalar_prefetch=0,
            grid=grid,
            in_specs=in_specs,
            out_specs=out_spec,
        ),
        compiler_params=pltpu.CompilerParams(
            dimension_semantics=("parallel",),
        ),
        cost_estimate=pl.CostEstimate(
            flops=flops, transcendentals=0, bytes_accessed=bytes_accessed),
    )(x, bias, w0x_p, *wh_p, wf_p)


# ---------------------------------------------------------------------------
# Parameter initialization (mirrors kaiming_leaky_init + zero final layer)
# ---------------------------------------------------------------------------
def init_params(key):
    # kaiming_normal_(a=0.2, mode='fan_in', nonlinearity='leaky_relu'):
    #   std = gain / sqrt(fan_in), gain = sqrt(2 / (1 + a^2))
    gain = (2.0 / (1.0 + NEG_SLOPE ** 2)) ** 0.5

    def kaiming(key, fan_in, fan_out):
        std = gain / (fan_in ** 0.5)
        # stored as (in, out) == torch weight (out, in) transposed
        return std * jax.random.normal(key, (fan_in, fan_out), dtype=jnp.float32)

    dim_in_total = DIM_IN_MAPPING + DIM_IN_FILM
    keys = jax.random.split(key, 1 + (N_HIDDEN_LAYERS - 1))

    # First mapping linear, split into the x-part and the condition-part.
    w0 = kaiming(keys[0], dim_in_total, N_NEURONS)
    w0x = w0[:DIM_IN_MAPPING]
    w0e = w0[DIM_IN_MAPPING:]

    wh_list = [
        kaiming(keys[1 + i], N_NEURONS, N_NEURONS)
        for i in range(N_HIDDEN_LAYERS - 1)
    ]

    # nn.init.zeros_(self.final_layer.weight)
    wf = jnp.zeros((N_NEURONS, DIM_OUT_FILM), dtype=jnp.float32)
    return w0x, w0e, wh_list, wf


def reference_forward(x, exp_condition, params):
    w0x, w0e, wh_list, wf = params
    e_rep = jnp.broadcast_to(exp_condition, (x.shape[0], exp_condition.shape[1]))
    w0 = jnp.concatenate([w0x, w0e], axis=0)
    h = _leaky_relu(jnp.concatenate([x, e_rep], axis=-1) @ w0)
    for w in wh_list:
        h = _leaky_relu(h @ w)
    return h @ wf


if __name__ == "__main__":
    key = jax.random.PRNGKey(0)
    kx, ke, kp, kwf = jax.random.split(key, 4)

    x = jax.random.normal(kx, (16, DIM_IN_MAPPING), dtype=jnp.float32)
    exp_condition = jax.random.normal(ke, (1, DIM_IN_FILM), dtype=jnp.float32)
    params = init_params(kp)

    # 1) Module-faithful params (zero-init final layer), bf16 matmul default,
    #    single grid step. Output is exactly zero, so comparison is exact.
    prep_bf16 = prepare_params(params)
    out = jax.block_until_ready(deformation_forward(x, exp_condition, prep_bf16))
    ref = reference_forward(x, exp_condition, params)
    assert out.shape == (16, DIM_OUT_FILM)
    assert jnp.allclose(out, ref, atol=1e-6)

    # 2) Non-zero final layer, f32 matmul path (tight tolerance, full math path).
    w0x, w0e, wh_list, wf = params
    wf_rand = 0.1 * jax.random.normal(kwf, wf.shape, dtype=jnp.float32)
    params_rand = (w0x, w0e, wh_list, wf_rand)
    prep_f32 = prepare_params(params_rand, compute_dtype=jnp.float32)
    out = jax.block_until_ready(deformation_forward(x, exp_condition, prep_f32))
    ref = reference_forward(x, exp_condition, params_rand)
    assert jnp.allclose(out, ref, atol=1e-5, rtol=1e-5)

    # 3) bf16 default on a larger, non-multiple batch: 2 parallel grid steps and a
    #    ragged (masked-writeback) last block. Relaxed tolerance vs the f32 ref.
    xl = jax.random.normal(kx, (1000, DIM_IN_MAPPING), dtype=jnp.float32)
    prep_rand_bf16 = prepare_params(params_rand)
    out_l = jax.block_until_ready(
        deformation_forward(xl, exp_condition, prep_rand_bf16))
    ref_l = reference_forward(xl, exp_condition, params_rand)
    assert out_l.shape == (1000, DIM_OUT_FILM)
    assert jnp.allclose(out_l, ref_l, atol=1e-1, rtol=5e-2)

    print("KERNEL_OK")
</pallas_src>

<mosaic_0001>
module attributes {stable_mosaic.version = 11 : i64} {
  func.func @_kernel(%arg0: i32, %arg1: memref<16x32xf32, #tpu.memory_space<vmem>>, %arg2: memref<1x128xf32, #tpu.memory_space<vmem>>, %arg3: memref<32x128xbf16, #tpu.memory_space<vmem>>, %arg4: memref<128x128xbf16, #tpu.memory_space<vmem>>, %arg5: memref<128x128xbf16, #tpu.memory_space<vmem>>, %arg6: memref<128x32xbf16, #tpu.memory_space<vmem>>, %arg7: memref<16x32xf32, #tpu.memory_space<vmem>>) attributes {dimension_semantics = [#tpu.dimension_semantics<parallel>], iteration_bounds = array<i64: 1>, scalar_prefetch = 0 : i64, scratch_operands = 0 : i64, tpu.core_type = #tpu.core_type<tc>, window_params = [{transform_indices = @transform_0, window_bounds = array<i64: 16, 32>}, {pipeline_mode = #tpu.pipeline_mode<synchronous>, transform_indices = @transform_1, window_bounds = array<i64: 1, 128>}, {pipeline_mode = #tpu.pipeline_mode<synchronous>, transform_indices = @transform_2, window_bounds = array<i64: 32, 128>}, {pipeline_mode = #tpu.pipeline_mode<synchronous>, transform_indices = @transform_3, window_bounds = array<i64: 128, 128>}, {pipeline_mode = #tpu.pipeline_mode<synchronous>, transform_indices = @transform_4, window_bounds = array<i64: 128, 128>}, {pipeline_mode = #tpu.pipeline_mode<synchronous>, transform_indices = @transform_5, window_bounds = array<i64: 128, 32>}, {transform_indices = @transform_6, window_bounds = array<i64: 16, 32>}]} {
    %c0 = arith.constant 0 : index
    %c0_0 = arith.constant 0 : index
    %0 = vector.load %arg1[%c0, %c0_0] : memref<16x32xf32, #tpu.memory_space<vmem>>, vector<16x32xf32>
    %1 = arith.truncf %0 : vector<16x32xf32> to vector<16x32xbf16>
    %c0_1 = arith.constant 0 : index
    %c0_2 = arith.constant 0 : index
    %2 = vector.load %arg3[%c0_1, %c0_2] : memref<32x128xbf16, #tpu.memory_space<vmem>>, vector<32x128xbf16>
    %cst = arith.constant dense<0.000000e+00> : vector<16x128xf32>
    %3 = tpu.matmul %1, %2, %cst {dimension_numbers = #tpu.dot_dimension_numbers<[1], [0], [0], [1], [0, 0, 1, 1], [], []>} : vector<16x32xbf16>, vector<32x128xbf16>, vector<16x128xf32> -> vector<16x128xf32>
    %c0_3 = arith.constant 0 : index
    %c0_4 = arith.constant 0 : index
    %4 = vector.load %arg2[%c0_3, %c0_4] : memref<1x128xf32, #tpu.memory_space<vmem>>, vector<1x128xf32>
    %5 = vector.broadcast %4 : vector<1x128xf32> to vector<16x128xf32>
    %6 = arith.addf %3, %5 : vector<16x128xf32>
    %cst_5 = arith.constant 0.000000e+00 : f32
    %7 = vector.broadcast %cst_5 : f32 to vector<16x128xf32>
    %8 = arith.cmpf ogt, %6, %7 : vector<16x128xf32>
    %cst_6 = arith.constant 2.000000e-01 : f32
    %9 = vector.broadcast %cst_6 : f32 to vector<16x128xf32>
    %10 = arith.mulf %9, %6 : vector<16x128xf32>
    %11 = arith.select %8, %6, %10 : vector<16x128xi1>, vector<16x128xf32>
    %12 = arith.truncf %11 : vector<16x128xf32> to vector<16x128xbf16>
    %c0_7 = arith.constant 0 : index
    %c0_8 = arith.constant 0 : index
    %13 = vector.load %arg4[%c0_7, %c0_8] : memref<128x128xbf16, #tpu.memory_space<vmem>>, vector<128x128xbf16>
    %cst_9 = arith.constant dense<0.000000e+00> : vector<16x128xf32>
    %14 = tpu.matmul %12, %13, %cst_9 {dimension_numbers = #tpu.dot_dimension_numbers<[1], [0], [0], [1], [0, 0, 1, 1], [], []>} : vector<16x128xbf16>, vector<128x128xbf16>, vector<16x128xf32> -> vector<16x128xf32>
    %cst_10 = arith.constant 0.000000e+00 : f32
    %15 = vector.broadcast %cst_10 : f32 to vector<16x128xf32>
    %16 = arith.cmpf ogt, %14, %15 : vector<16x128xf32>
    %cst_11 = arith.constant 2.000000e-01 : f32
    %17 = vector.broadcast %cst_11 : f32 to vector<16x128xf32>
    %18 = arith.mulf %17, %14 : vector<16x128xf32>
    %19 = arith.select %16, %14, %18 : vector<16x128xi1>, vector<16x128xf32>
    %20 = arith.truncf %19 : vector<16x128xf32> to vector<16x128xbf16>
    %c0_12 = arith.constant 0 : index
    %c0_13 = arith.constant 0 : index
    %21 = vector.load %arg5[%c0_12, %c0_13] : memref<128x128xbf16, #tpu.memory_space<vmem>>, vector<128x128xbf16>
    %cst_14 = arith.constant dense<0.000000e+00> : vector<16x128xf32>
    %22 = tpu.matmul %20, %21, %cst_14 {dimension_numbers = #tpu.dot_dimension_numbers<[1], [0], [0], [1], [0, 0, 1, 1], [], []>} : vector<16x128xbf16>, vector<128x128xbf16>, vector<16x128xf32> -> vector<16x128xf32>
    %cst_15 = arith.constant 0.000000e+00 : f32
    %23 = vector.broadcast %cst_15 : f32 to vector<16x128xf32>
    %24 = arith.cmpf ogt, %22, %23 : vector<16x128xf32>
    %cst_16 = arith.constant 2.000000e-01 : f32
    %25 = vector.broadcast %cst_16 : f32 to vector<16x128xf32>
    %26 = arith.mulf %25, %22 : vector<16x128xf32>
    %27 = arith.select %24, %22, %26 : vector<16x128xi1>, vector<16x128xf32>
    %28 = arith.truncf %27 : vector<16x128xf32> to vector<16x128xbf16>
    %c0_17 = arith.constant 0 : index
    %c0_18 = arith.constant 0 : index
    %29 = vector.load %arg6[%c0_17, %c0_18] : memref<128x32xbf16, #tpu.memory_space<vmem>>, vector<128x32xbf16>
    %cst_19 = arith.constant dense<0.000000e+00> : vector<16x32xf32>
    %30 = tpu.matmul %28, %29, %cst_19 {dimension_numbers = #tpu.dot_dimension_numbers<[1], [0], [0], [1], [0, 0, 1, 1], [], []>} : vector<16x128xbf16>, vector<128x32xbf16>, vector<16x32xf32> -> vector<16x32xf32>
    %c0_20 = arith.constant 0 : index
    %c0_21 = arith.constant 0 : index
    %31 = vector.load %arg7[%c0_20, %c0_21] : memref<16x32xf32, #tpu.memory_space<vmem>>, vector<16x32xf32>
    tpu.vector_store %arg7[%c0_20, %c0_21], %30 {strides = array<i32>} : memref<16x32xf32, #tpu.memory_space<vmem>>, vector<16x32xf32>,
    return
  }
  func.func @transform_0(%arg0: i32) -> (i32, i32) {
    %c0_i32 = arith.constant 0 : i32
    %c0_i32_0 = arith.constant 0 : i32
    return %arg0, %c0_i32 : i32, i32
  }
  func.func @transform_1(%arg0: i32) -> (i32, i32) {
    %c0_i32 = arith.constant 0 : i32
    %c0_i32_0 = arith.constant 0 : i32
    %c0_i32_1 = arith.constant 0 : i32
    return %c0_i32, %c0_i32_0 : i32, i32
  }
  func.func @transform_2(%arg0: i32) -> (i32, i32) {
    %c0_i32 = arith.constant 0 : i32
    %c0_i32_0 = arith.constant 0 : i32
    %c0_i32_1 = arith.constant 0 : i32
    return %c0_i32, %c0_i32_0 : i32, i32
  }
  func.func @transform_3(%arg0: i32) -> (i32, i32) {
    %c0_i32 = arith.constant 0 : i32
    %c0_i32_0 = arith.constant 0 : i32
    %c0_i32_1 = arith.constant 0 : i32
    return %c0_i32, %c0_i32_0 : i32, i32
  }
  func.func @transform_4(%arg0: i32) -> (i32, i32) {
    %c0_i32 = arith.constant 0 : i32
    %c0_i32_0 = arith.constant 0 : i32
    %c0_i32_1 = arith.constant 0 : i32
    return %c0_i32, %c0_i32_0 : i32, i32
  }
  func.func @transform_5(%arg0: i32) -> (i32, i32) {
    %c0_i32 = arith.constant 0 : i32
    %c0_i32_0 = arith.constant 0 : i32
    %c0_i32_1 = arith.constant 0 : i32
    return %c0_i32, %c0_i32_0 : i32, i32
  }
  func.func @transform_6(%arg0: i32) -> (i32, i32) {
    %c0_i32 = arith.constant 0 : i32
    %c0_i32_0 = arith.constant 0 : i32
    return %arg0, %c0_i32 : i32, i32
  }
}

</mosaic_0001>

<llo_original>
// kernel: tpu_custom_call.1
$region0: #{tpu_custom_call.1}
  #allocation0 [shape = 'u32[]', space=smem, size = 0x4, offset = 0x4, fixed_abs, tag = 'smem constant byte address 0x4 - core index']
  #allocation1 [shape = 'u32[144,128]{1,0:T(1,128)}', space=vmem, size = 0x12000, scoped, tag = 'internal scratch']
  %s0 = inlined_call_operand.vmem [shape: f32[16,32], index: 0, kind: input, shape index: {}]
  %s1 = inlined_call_operand.vmem [shape: f32[1,128], index: 1, kind: input, shape index: {}]
  %s2 = inlined_call_operand.hbm [shape: bf16[32,128], index: 2, kind: input, shape index: {}]
  %s3 = inlined_call_operand.vmem [shape: bf16[128,128], index: 3, kind: input, shape index: {}]
  %s4 = inlined_call_operand.hbm [shape: bf16[128,128], index: 4, kind: input, shape index: {}]
  %s5 = inlined_call_operand.vmem [shape: bf16[128,32], index: 5, kind: input, shape index: {}]
  %s6 = inlined_call_operand.hbm [shape: f32[16,32], index: 6, kind: output, shape index: {}]
  %s7 = sld [smem:[#allocation0]]
  $region42: #{tpu_custom_call.1} parent=0
    _
  %s9 = ssub.s32 1, %s7
  %s10 = scalar_select 0, %s9, %s7
  $region1: #{tpu_custom_call.1} parent=0
    #allocation2 [shape = 'u8[8192]{0}', space=vmem, size = 0x2000, scoped, tag = 'input window, operand 2, single buffered']
    #allocation3 [shape = 's32[1]{0}', space=sflag, size = 0x4, scoped, tag = 'scoped memory for tpu_custom_call.1']
    #allocation4 [shape = 's32[1]{0}', space=sflag, size = 0x4, scoped, tag = 'scoped memory for tpu_custom_call.1']
    #allocation5 [shape = 'u8[32768]{0}', space=vmem, size = 0x8000, scoped, tag = 'input window, operand 4, single buffered']
    #allocation6 [shape = 's32[1]{0}', space=sflag, size = 0x4, scoped, tag = 'scoped memory for tpu_custom_call.1']
    #allocation7 [shape = 'u8[8192]{0}', space=vmem, size = 0x2000, scoped, tag = 'output window, operand 0, single buffered']
    %11 = vsyncpa [#allocation3], 0
    %12 = vsyncpa [#allocation6], 0
    %13 = vsyncpa [#allocation4], 0
    // Predicated region
    $region2: #{tpu_custom_call.1} parent=1 // pred_check
      _
    $region3: #{tpu_custom_call.1} parent=1 // pred_check_branch
      %15 = sbr.rel (0) target = $region5
    $region4: #{tpu_custom_call.1} parent=1 // pred_region
      _
    $region5: #{tpu_custom_call.1} parent=1 // pred_fallthru
      _
    // Predicated region
    $region6: #{tpu_custom_call.1} parent=1 // pred_check
      _
    $region7: #{tpu_custom_call.1} parent=1 // pred_check_branch
      %17 = sbr.rel (0) target = $region9
    $region8: #{tpu_custom_call.1} parent=1 // pred_region
      _
    $region9: #{tpu_custom_call.1} parent=1 // pred_fallthru
      _
    // Predicated region
    $region10: #{tpu_custom_call.1} parent=1 // pred_check
      _
    $region11: #{tpu_custom_call.1} parent=1 // pred_check_branch
      %19 = sbr.rel (0) target = $region13
    $region12: #{tpu_custom_call.1} parent=1 // pred_region
      %s21 = ssub.s32 256, 256
      %22 = vsyncadd [#allocation3], %s21
      %s23 = sshll.u32 [#allocation2], 4
      %s24 = int_to_ptr.vmem [resolvable:$true] %s23
      %29 = dma.hbm_to_vmem [thread:$0]  %s2, 256, %s24, [#allocation3], 64, 64, 4
    $region13: #{tpu_custom_call.1} parent=1 // pred_fallthru
      _
    // Predicated region
    $region14: #{tpu_custom_call.1} parent=1 // pred_check
      _
    $region15: #{tpu_custom_call.1} parent=1 // pred_check_branch
      %31 = sbr.rel (0) target = $region17
    $region16: #{tpu_custom_call.1} parent=1 // pred_region
      _
    $region17: #{tpu_custom_call.1} parent=1 // pred_fallthru
      _
    // Predicated region
    $region18: #{tpu_custom_call.1} parent=1 // pred_check
      _
    $region19: #{tpu_custom_call.1} parent=1 // pred_check_branch
      %33 = sbr.rel (0) target = $region21
    $region20: #{tpu_custom_call.1} parent=1 // pred_region
      %s35 = ssub.s32 1024, 1024
      %36 = vsyncadd [#allocation6], %s35
      %s37 = sshll.u32 [#allocation5], 4
      %s38 = int_to_ptr.vmem [resolvable:$true] %s37
      %43 = dma.hbm_to_vmem [thread:$0]  %s4, 1024, %s38, [#allocation6], 64, 64, 4
    $region21: #{tpu_custom_call.1} parent=1 // pred_fallthru
      _
    // Predicated region
    $region22: #{tpu_custom_call.1} parent=1 // pred_check
      _
    $region23: #{tpu_custom_call.1} parent=1 // pred_check_branch
      %45 = sbr.rel (0) target = $region25
    $region24: #{tpu_custom_call.1} parent=1 // pred_region
      _
    $region25: #{tpu_custom_call.1} parent=1 // pred_fallthru
      _
    // Predicated region
    $region26: #{tpu_custom_call.1} parent=1 // pred_check
      _
    $region27: #{tpu_custom_call.1} parent=1 // pred_check_branch
      %47 = sbr.rel (0) target = $region29
    $region28: #{tpu_custom_call.1} parent=1 // pred_region
      %48 = dma.done [#allocation3], 256
    $region29: #{tpu_custom_call.1} parent=1 // pred_fallthru
      _
    // Predicated region
    $region30: #{tpu_custom_call.1} parent=1 // pred_check
      _
    $region31: #{tpu_custom_call.1} parent=1 // pred_check_branch
      %50 = sbr.rel (0) target = $region33
    $region32: #{tpu_custom_call.1} parent=1 // pred_region
      %51 = dma.done [#allocation6], 1024
    $region33: #{tpu_custom_call.1} parent=1 // pred_fallthru
      _
    %v53 = vld [vmem:[%s0] sm:$0xff]
    %v54 = vld [vmem:[%s0 + $0x8] sm:$0xff]
    %v55 = vpack.c.bf16 %v54, %v53
    %v56 = vld [vmem:[#allocation2] sm:$0xf]
    %v57 = vld [vmem:[#allocation2 + $0x4] sm:$0xf]
    %v58 = vld [vmem:[#allocation2 + $0x8] sm:$0xf]
    %v59 = vld [vmem:[#allocation2 + $0xc] sm:$0xf]
    %v60 = vld [vmem:[%s1] sm:$0x1]
    %v62 = vlaneseq
    %v63 = vshrl.u32 %v62, 7
    %v64 = vsub.s32 0, %v63
    %v65 = vrot.slane %v60, %v64
    %v71 = vunpack.c.l.b16 %v56
    %v72 = vunpack.c.l.b16 %v57
    %v73 = vunpack.c.l.b16 %v58
    %v74 = vunpack.c.l.b16 %v59
    %v75 = vpack.c.b16 %v72, %v71
    %v76 = vpack.c.b16 %v74, %v73
    %vm79 = vcmask 261120
    %v81 = vsel %vm79, %v55, 0
    %83 = vmatprep.subr.bf16.mxu0 0
    %84 = vmatpush1.bf16.msra.mxu0 %v75
    %85 = vmatprep.subr.bf16.mxu0 0
    %86 = vmatpush1.bf16.msra.mxu0 %v76
    %87 = vmatprep.subr.bf16.mxu0 0
    %88 = vmatpush1.bf16.msra.mxu0 0
    %89 = vmatprep.subr.bf16.mxu0 0
    %90 = vmatpush1.bf16.msra.mxu0 0
    %91 = vmatprep.subr.bf16.mxu0 0
    %92 = vmatpush1.bf16.msra.mxu0 0
    %93 = vmatprep.subr.bf16.mxu0 0
    %94 = vmatpush1.bf16.msra.mxu0 0
    %95 = vmatprep.subr.bf16.mxu0 0
    %96 = vmatpush1.bf16.msra.mxu0 0
    %97 = vmatprep.subr.bf16.mxu0 0
    %98 = vmatpush1.bf16.msra.mxu0 0
    %99 = vmatprep.subr.bf16.mxu0 0
    %100 = vmatpush1.bf16.msra.mxu0 0
    %101 = vmatprep.subr.bf16.mxu0 0
    %102 = vmatpush1.bf16.msra.mxu0 0
    %103 = vmatprep.subr.bf16.mxu0 0
    %104 = vmatpush1.bf16.msra.mxu0 0
    %105 = vmatprep.subr.bf16.mxu0 0
    %106 = vmatpush1.bf16.msra.mxu0 0
    %107 = vmatprep.subr.bf16.mxu0 0
    %108 = vmatpush1.bf16.msra.mxu0 0
    %109 = vmatprep.subr.bf16.mxu0 0
    %110 = vmatpush1.bf16.msra.mxu0 0
    %111 = vmatprep.subr.bf16.mxu0 0
    %112 = vmatpush1.bf16.msra.mxu0 0
    %113 = vmatprep.subr.bf16.mxu0 0
    %114 = vmatpush1.bf16.msra.mxu0 0
    %115 = vmatprep.mubr.bf16.mxu0 0
    %116 = vmatmul.mubr.bf16.gmra.mrb[0].mxu0 %v81
    %v117 = vpop.f32.mrb[0].mxu0
    %v118 = vadd.f32 %v65, %v117
    %v119 = vpop.f32.mrb[0].mxu0
    %v120 = vpop.f32.mrb[0].mxu0
    %v121 = vadd.f32 %v65, %v120
    %v122 = vpop.f32.mrb[0].mxu0
    %123 = vdwg.mxu0
    %vm124 = vcmp.gt.f32.partialorder %v118, 0.0
    %vm125 = vcmp.gt.f32.partialorder %v121, 0.0
    %v126 = vmul.f32 %v118, 0.2
    %v127 = vmul.f32 %v121, 0.2
    %v128 = vsel %vm124, %v118, %v126
    %v129 = vsel %vm125, %v121, %v127
    %v130 = vpack.c.bf16 %v129, %v128
    %v131 = vld [vmem:[%s3] sm:$0xf]
    %v132 = vld [vmem:[%s3 + $0x4] sm:$0xf]
    %v133 = vld [vmem:[%s3 + $0x8] sm:$0xf]
    %v134 = vld [vmem:[%s3 + $0xc] sm:$0xf]
    %v135 = vld [vmem:[%s3 + $0x10] sm:$0xf]
    %v136 = vld [vmem:[%s3 + $0x14] sm:$0xf]
    %v137 = vld [vmem:[%s3 + $0x18] sm:$0xf]
    %v138 = vld [vmem:[%s3 + $0x1c] sm:$0xf]
    %v139 = vld [vmem:[%s3 + $0x20] sm:$0xf]
    %v140 = vld [vmem:[%s3 + $0x24] sm:$0xf]
    %v141 = vld [vmem:[%s3 + $0x28] sm:$0xf]
    %v142 = vld [vmem:[%s3 + $0x2c] sm:$0xf]
    %v143 = vld [vmem:[%s3 + $0x30] sm:$0xf]
    %v144 = vld [vmem:[%s3 + $0x34] sm:$0xf]
    %v145 = vld [vmem:[%s3 + $0x38] sm:$0xf]
    %v146 = vld [vmem:[%s3 + $0x3c] sm:$0xf]
    %v163 = vunpack.c.l.b16 %v131
    %v164 = vunpack.c.l.b16 %v132
    %v165 = vunpack.c.l.b16 %v133
    %v166 = vunpack.c.l.b16 %v134
    %v167 = vunpack.c.l.b16 %v135
    %v168 = vunpack.c.l.b16 %v136
    %v169 = vunpack.c.l.b16 %v137
    %v170 = vunpack.c.l.b16 %v138
    %v171 = vunpack.c.l.b16 %v139
    %v172 = vunpack.c.l.b16 %v140
    %v173 = vunpack.c.l.b16 %v141
    %v174 = vunpack.c.l.b16 %v142
    %v175 = vunpack.c.l.b16 %v143
    %v176 = vunpack.c.l.b16 %v144
    %v177 = vunpack.c.l.b16 %v145
    %v178 = vunpack.c.l.b16 %v146
    %v179 = vpack.c.b16 %v164, %v163
    %v180 = vpack.c.b16 %v166, %v165
    %v181 = vpack.c.b16 %v168, %v167
    %v182 = vpack.c.b16 %v170, %v169
    %v183 = vpack.c.b16 %v172, %v171
    %v184 = vpack.c.b16 %v174, %v173
    %v185 = vpack.c.b16 %v176, %v175
    %v186 = vpack.c.b16 %v178, %v177
    %195 = vmatprep.subr.bf16.mxu0 0
    %196 = vmatpush1.bf16.msra.mxu0 %v179
    %197 = vmatprep.subr.bf16.mxu0 0
    %198 = vmatpush1.bf16.msra.mxu0 %v180
    %199 = vmatprep.subr.bf16.mxu0 0
    %200 = vmatpush1.bf16.msra.mxu0 %v181
    %201 = vmatprep.subr.bf16.mxu0 0
    %202 = vmatpush1.bf16.msra.mxu0 %v182
    %203 = vmatprep.subr.bf16.mxu0 0
    %204 = vmatpush1.bf16.msra.mxu0 %v183
    %205 = vmatprep.subr.bf16.mxu0 0
    %206 = vmatpush1.bf16.msra.mxu0 %v184
    %207 = vmatprep.subr.bf16.mxu0 0
    %208 = vmatpush1.bf16.msra.mxu0 %v185
    %209 = vmatprep.subr.bf16.mxu0 0
    %210 = vmatpush1.bf16.msra.mxu0 %v186
    %211 = vmatprep.subr.bf16.mxu0 0
    %212 = vmatpush1.bf16.msra.mxu0 0
    %213 = vmatprep.subr.bf16.mxu0 0
    %214 = vmatpush1.bf16.msra.mxu0 0
    %215 = vmatprep.subr.bf16.mxu0 0
    %216 = vmatpush1.bf16.msra.mxu0 0
    %217 = vmatprep.subr.bf16.mxu0 0
    %218 = vmatpush1.bf16.msra.mxu0 0
    %219 = vmatprep.subr.bf16.mxu0 0
    %220 = vmatpush1.bf16.msra.mxu0 0
    %221 = vmatprep.subr.bf16.mxu0 0
    %222 = vmatpush1.bf16.msra.mxu0 0
    %223 = vmatprep.subr.bf16.mxu0 0
    %224 = vmatpush1.bf16.msra.mxu0 0
    %225 = vmatprep.subr.bf16.mxu0 0
    %226 = vmatpush1.bf16.msra.mxu0 0
    %227 = vmatprep.mubr.bf16.mxu0 0
    %228 = vmatmul.mubr.bf16.gmra.mrb[0].mxu0 %v130
    %v229 = vpop.f32.mrb[0].mxu0
    %v230 = vadd.f32 0.0, %v229
    %v231 = vpop.f32.mrb[0].mxu0
    %v232 = vpop.f32.mrb[0].mxu0
    %v233 = vadd.f32 0.0, %v232
    %v234 = vpop.f32.mrb[0].mxu0
    %235 = vdwg.mxu0
    %vm236 = vcmp.gt.f32.partialorder %v230, 0.0
    %vm237 = vcmp.gt.f32.partialorder %v233, 0.0
    %v238 = vmul.f32 %v230, 0.2
    %v239 = vmul.f32 %v233, 0.2
    %v240 = vsel %vm236, %v230, %v238
    %v241 = vsel %vm237, %v233, %v239
    %v242 = vpack.c.bf16 %v241, %v240
    %v243 = vld [vmem:[#allocation5] sm:$0xf]
    %v244 = vld [vmem:[#allocation5 + $0x4] sm:$0xf]
    %v245 = vld [vmem:[#allocation5 + $0x8] sm:$0xf]
    %v246 = vld [vmem:[#allocation5 + $0xc] sm:$0xf]
    %v247 = vld [vmem:[#allocation5 + $0x10] sm:$0xf]
    %v248 = vld [vmem:[#allocation5 + $0x14] sm:$0xf]
    %v249 = vld [vmem:[#allocation5 + $0x18] sm:$0xf]
    %v250 = vld [vmem:[#allocation5 + $0x1c] sm:$0xf]
    %v251 = vld [vmem:[#allocation5 + $0x20] sm:$0xf]
    %v252 = vld [vmem:[#allocation5 + $0x24] sm:$0xf]
    %v253 = vld [vmem:[#allocation5 + $0x28] sm:$0xf]
    %v254 = vld [vmem:[#allocation5 + $0x2c] sm:$0xf]
    %v255 = vld [vmem:[#allocation5 + $0x30] sm:$0xf]
    %v256 = vld [vmem:[#allocation5 + $0x34] sm:$0xf]
    %v257 = vld [vmem:[#allocation5 + $0x38] sm:$0xf]
    %v258 = vld [vmem:[#allocation5 + $0x3c] sm:$0xf]
    %v275 = vunpack.c.l.b16 %v243
    %v276 = vunpack.c.l.b16 %v244
    %v277 = vunpack.c.l.b16 %v245
    %v278 = vunpack.c.l.b16 %v246
    %v279 = vunpack.c.l.b16 %v247
    %v280 = vunpack.c.l.b16 %v248
    %v281 = vunpack.c.l.b16 %v249
    %v282 = vunpack.c.l.b16 %v250
    %v283 = vunpack.c.l.b16 %v251
    %v284 = vunpack.c.l.b16 %v252
    %v285 = vunpack.c.l.b16 %v253
    %v286 = vunpack.c.l.b16 %v254
    %v287 = vunpack.c.l.b16 %v255
    %v288 = vunpack.c.l.b16 %v256
    %v289 = vunpack.c.l.b16 %v257
    %v290 = vunpack.c.l.b16 %v258
    %v291 = vpack.c.b16 %v276, %v275
    %v292 = vpack.c.b16 %v278, %v277
    %v293 = vpack.c.b16 %v280, %v279
    %v294 = vpack.c.b16 %v282, %v281
    %v295 = vpack.c.b16 %v284, %v283
    %v296 = vpack.c.b16 %v286, %v285
    %v297 = vpack.c.b16 %v288, %v287
    %v298 = vpack.c.b16 %v290, %v289
    %307 = vmatprep.subr.bf16.mxu0 0
    %308 = vmatpush1.bf16.msra.mxu0 %v291
    %309 = vmatprep.subr.bf16.mxu0 0
    %310 = vmatpush1.bf16.msra.mxu0 %v292
    %311 = vmatprep.subr.bf16.mxu0 0
    %312 = vmatpush1.bf16.msra.mxu0 %v293
    %313 = vmatprep.subr.bf16.mxu0 0
    %314 = vmatpush1.bf16.msra.mxu0 %v294
    %315 = vmatprep.subr.bf16.mxu0 0
    %316 = vmatpush1.bf16.msra.mxu0 %v295
    %317 = vmatprep.subr.bf16.mxu0 0
    %318 = vmatpush1.bf16.msra.mxu0 %v296
    %319 = vmatprep.subr.bf16.mxu0 0
    %320 = vmatpush1.bf16.msra.mxu0 %v297
    %321 = vmatprep.subr.bf16.mxu0 0
    %322 = vmatpush1.bf16.msra.mxu0 %v298
    %323 = vmatprep.subr.bf16.mxu0 0
    %324 = vmatpush1.bf16.msra.mxu0 0
    %325 = vmatprep.subr.bf16.mxu0 0
    %326 = vmatpush1.bf16.msra.mxu0 0
    %327 = vmatprep.subr.bf16.mxu0 0
    %328 = vmatpush1.bf16.msra.mxu0 0
    %329 = vmatprep.subr.bf16.mxu0 0
    %330 = vmatpush1.bf16.msra.mxu0 0
    %331 = vmatprep.subr.bf16.mxu0 0
    %332 = vmatpush1.bf16.msra.mxu0 0
    %333 = vmatprep.subr.bf16.mxu0 0
    %334 = vmatpush1.bf16.msra.mxu0 0
    %335 = vmatprep.subr.bf16.mxu0 0
    %336 = vmatpush1.bf16.msra.mxu0 0
    %337 = vmatprep.subr.bf16.mxu0 0
    %338 = vmatpush1.bf16.msra.mxu0 0
    %339 = vmatprep.mubr.bf16.mxu0 0
    %340 = vmatmul.mubr.bf16.gmra.mrb[0].mxu0 %v242
    %v341 = vpop.f32.mrb[0].mxu0
    %v342 = vadd.f32 0.0, %v341
    %v343 = vpop.f32.mrb[0].mxu0
    %v344 = vpop.f32.mrb[0].mxu0
    %v345 = vadd.f32 0.0, %v344
    %v346 = vpop.f32.mrb[0].mxu0
    %347 = vdwg.mxu0
    %vm348 = vcmp.gt.f32.partialorder %v342, 0.0
    %vm349 = vcmp.gt.f32.partialorder %v345, 0.0
    %v350 = vmul.f32 %v342, 0.2
    %v351 = vmul.f32 %v345, 0.2
    %v352 = vsel %vm348, %v342, %v350
    %v353 = vsel %vm349, %v345, %v351
    %v354 = vpack.c.bf16 %v353, %v352
    %v355 = vld [vmem:[%s5] sm:$0xf]
    %v356 = vld [vmem:[%s5 + $0x4] sm:$0xf]
    %v357 = vld [vmem:[%s5 + $0x8] sm:$0xf]
    %v358 = vld [vmem:[%s5 + $0xc] sm:$0xf]
    %v359 = vld [vmem:[%s5 + $0x10] sm:$0xf]
    %v360 = vld [vmem:[%s5 + $0x14] sm:$0xf]
    %v361 = vld [vmem:[%s5 + $0x18] sm:$0xf]
    %v362 = vld [vmem:[%s5 + $0x1c] sm:$0xf]
    %v363 = vld [vmem:[%s5 + $0x20] sm:$0xf]
    %v364 = vld [vmem:[%s5 + $0x24] sm:$0xf]
    %v365 = vld [vmem:[%s5 + $0x28] sm:$0xf]
    %v366 = vld [vmem:[%s5 + $0x2c] sm:$0xf]
    %v367 = vld [vmem:[%s5 + $0x30] sm:$0xf]
    %v368 = vld [vmem:[%s5 + $0x34] sm:$0xf]
    %v369 = vld [vmem:[%s5 + $0x38] sm:$0xf]
    %v370 = vld [vmem:[%s5 + $0x3c] sm:$0xf]
    %v387 = vunpack.c.l.b16 %v355
    %v388 = vunpack.c.l.b16 %v356
    %v389 = vunpack.c.l.b16 %v357
    %v390 = vunpack.c.l.b16 %v358
    %v391 = vunpack.c.l.b16 %v359
    %v392 = vunpack.c.l.b16 %v360
    %v393 = vunpack.c.l.b16 %v361
    %v394 = vunpack.c.l.b16 %v362
    %v395 = vunpack.c.l.b16 %v363
    %v396 = vunpack.c.l.b16 %v364
    %v397 = vunpack.c.l.b16 %v365
    %v398 = vunpack.c.l.b16 %v366
    %v399 = vunpack.c.l.b16 %v367
    %v400 = vunpack.c.l.b16 %v368
    %v401 = vunpack.c.l.b16 %v369
    %v402 = vunpack.c.l.b16 %v370
    %v403 = vpack.c.b16 %v388, %v387
    %v404 = vpack.c.b16 %v390, %v389
    %v405 = vpack.c.b16 %v392, %v391
    %v406 = vpack.c.b16 %v394, %v393
    %v407 = vpack.c.b16 %v396, %v395
    %v408 = vpack.c.b16 %v398, %v397
    %v409 = vpack.c.b16 %v400, %v399
    %v410 = vpack.c.b16 %v402, %v401
    %419 = vmatprep.subr.bf16.mxu0 0
    %420 = vmatpush1.bf16.msra.mxu0 %v403
    %421 = vmatprep.subr.bf16.mxu0 0
    %422 = vmatpush1.bf16.msra.mxu0 %v404
    %423 = vmatprep.subr.bf16.mxu0 0
    %424 = vmatpush1.bf16.msra.mxu0 %v405
    %425 = vmatprep.subr.bf16.mxu0 0
    %426 = vmatpush1.bf16.msra.mxu0 %v406
    %427 = vmatprep.subr.bf16.mxu0 0
    %428 = vmatpush1.bf16.msra.mxu0 %v407
    %429 = vmatprep.subr.bf16.mxu0 0
    %430 = vmatpush1.bf16.msra.mxu0 %v408
    %431 = vmatprep.subr.bf16.mxu0 0
    %432 = vmatpush1.bf16.msra.mxu0 %v409
    %433 = vmatprep.subr.bf16.mxu0 0
    %434 = vmatpush1.bf16.msra.mxu0 %v410
    %435 = vmatprep.subr.bf16.mxu0 0
    %436 = vmatpush1.bf16.msra.mxu0 0
    %437 = vmatprep.subr.bf16.mxu0 0
    %438 = vmatpush1.bf16.msra.mxu0 0
    %439 = vmatprep.subr.bf16.mxu0 0
    %440 = vmatpush1.bf16.msra.mxu0 0
    %441 = vmatprep.subr.bf16.mxu0 0
    %442 = vmatpush1.bf16.msra.mxu0 0
    %443 = vmatprep.subr.bf16.mxu0 0
    %444 = vmatpush1.bf16.msra.mxu0 0
    %445 = vmatprep.subr.bf16.mxu0 0
    %446 = vmatpush1.bf16.msra.mxu0 0
    %447 = vmatprep.subr.bf16.mxu0 0
    %448 = vmatpush1.bf16.msra.mxu0 0
    %449 = vmatprep.subr.bf16.mxu0 0
    %450 = vmatpush1.bf16.msra.mxu0 0
    %451 = vmatprep.mubr.bf16.mxu0 0
    %452 = vmatmul.mubr.bf16.gmra.mrb[0].mxu0 %v354
    %v453 = vpop.f32.mrb[0].mxu0
    %v454 = vadd.f32 0.0, %v453
    %v455 = vpop.f32.mrb[0].mxu0
    %v456 = vpop.f32.mrb[0].mxu0
    %v457 = vadd.f32 0.0, %v456
    %v458 = vpop.f32.mrb[0].mxu0
    %459 = vdwg.mxu0
    %460 = vst.msk [vmem:[#allocation7] sm:$0xff] %vm79, %v454
    %461 = vst.msk [vmem:[#allocation7 + $0x8] sm:$0xff] %vm79, %v457
    // Predicated region
    $region34: #{tpu_custom_call.1} parent=1 // pred_check
      _
    $region35: #{tpu_custom_call.1} parent=1 // pred_check_branch
      %463 = sbr.rel (0) target = $region37
    $region36: #{tpu_custom_call.1} parent=1 // pred_region
      %s465 = ssub.s32 256, 256
      %466 = vsyncadd [#allocation4], %s465
      %s467 = sshll.u32 [#allocation7], 4
      %s468 = int_to_ptr.vmem [resolvable:$true] %s467
      %473 = dma.vmem_to_hbm [thread:$0]  %s468, 256, %s6, [#allocation4], 128, 128, 8
    $region37: #{tpu_custom_call.1} parent=1 // pred_fallthru
      _
    // Predicated region
    $region38: #{tpu_custom_call.1} parent=1 // pred_check
      _
    $region39: #{tpu_custom_call.1} parent=1 // pred_check_branch
      %475 = sbr.rel (0) target = $region41
    $region40: #{tpu_custom_call.1} parent=1 // pred_region
      %476 = dma.done [#allocation4], 256
    $region41: #{tpu_custom_call.1} parent=1 // pred_fallthru
      _
    %477 = vsyncpa [#allocation3], 1
    %478 = vsyncpa [#allocation6], 1
    %479 = vsyncpa [#allocation4], 1

</llo_original>
